<compile_context>
chip_gen: v7x
topology: tpu7x:2x2x1
jax: 0.10.0
libtpu: 0.0.40
codegen_flags: <defaults>
</compile_context>

<pallas_src>
import functools

import jax
import jax.numpy as jnp
from jax.experimental import pallas as pl
from jax.experimental.pallas import tpu as pltpu


_SUB = 8
_LANE = 128
_CHUNK = _SUB * _LANE          # 1024 f32 elements per (8,128) slab (4 KiB)
_G_TILE_MAX = 2048             # 2048 slabs * 4 KiB = 8 MiB per input tile
_P = 8                         # independent partial accumulators (chain break)


def pescaling_kernel(params_ref, tail_ref, x_ref, o_ref, acc_ref, *, g0, g_tile):
    # params_ref: SMEM (5,) f32 = [w1, b1, w2, b2, 1/N]
    # tail_ref:   SMEM (B,) f32 = per-batch sum of the sub-slab tail (0 if none)
    # x_ref:      VMEM (1, g_tile, 8, 128) f32 -- one reduction tile of row b
    # o_ref:      VMEM (1, 1, 1) f32           -- resident across reduction axis
    # acc_ref:    VMEM (_P, 8, 128) f32 scratch -- independent partial sums
    b = pl.program_id(0)
    k = pl.program_id(1)

    K = -(-g0 // g_tile)                 # static grid length along reduction
    last_valid = g0 - (K - 1) * g_tile   # static valid slab count of last tile

    @pl.when(k == 0)
    def _init():
        acc_ref[...] = jnp.zeros_like(acc_ref)

    def accumulate(n):
        # Sum the first `n` (static) slabs of this tile into the partial
        # accumulators. Splitting into _P chains keeps the vadd dependency
        # chain ~n/_P long instead of n (hidden under the HBM DMA).
        main = (n // _P) * _P
        if main:
            x4 = x_ref[0, :main].reshape(main // _P, _P, _SUB, _LANE)
            acc_ref[...] += jnp.sum(x4, axis=0)
        if main != n:
            acc_ref[0] += jnp.sum(x_ref[0, main:n], axis=0)

    if last_valid == g_tile:
        # Every tile is full -- no partial-tile handling needed.
        accumulate(g_tile)
    else:
        # The last block extends past the array; its overrun slabs hold
        # garbage (not zeros), so they are statically sliced away and never
        # read.
        @pl.when(k < K - 1)
        def _full_tile():
            accumulate(g_tile)

        @pl.when(k == K - 1)
        def _partial_tile():
            accumulate(last_valid)

    @pl.when(k == K - 1)
    def _finalize():
        w1 = params_ref[0]
        b1 = params_ref[1]
        w2 = params_ref[2]
        b2 = params_ref[3]
        inv_n = params_ref[4]
        # Single cross-lane/sublane reduce (XLU) once per batch row.
        total = jnp.sum(acc_ref[...], keepdims=True) + tail_ref[b]   # (1,1,1)
        e = total * inv_n                                 # global mean over C*H*W
        h = jnp.maximum(e * w1 + b1, 0.0)                 # linear1 (1->1) + ReLU
        y = jax.nn.sigmoid(h * w2 + b2)                   # linear2 (1->1) + sigmoid
        o_ref[...] = y.astype(o_ref.dtype)


def pescaling(x, w1, b1, w2, b2, *, g_tile_max=_G_TILE_MAX):
    """x: (B, C, H, W) float32; returns (B, 1, 1) float32."""
    B, C, H, W = x.shape
    N = C * H * W

    xf = x.reshape(B, N)
    if xf.dtype != jnp.float32:
        xf = xf.astype(jnp.float32)

    g0 = N // _CHUNK                 # number of full (8,128) slabs per row
    rem = N - g0 * _CHUNK            # sub-slab tail elements per row

    if rem == 0 and g0 > 0:
        # Common well-shaped case: zero-copy view, no padding, no tail.
        xg = xf.reshape(B, g0, _SUB, _LANE)
        tails = jnp.zeros((B,), jnp.float32)
    else:
        # Cheap slice-sum of the ragged tail (< 4 KiB per row); folded into
        # the kernel finalize as a per-batch scalar.
        tails = jnp.sum(xf[:, g0 * _CHUNK:], axis=-1).astype(jnp.float32)
        if g0 > 0:
            # TODO(synk): this aligned-prefix slice+reshape still costs one
            # bulk copy; a manual-DMA (memory_space=pl.ANY) variant would
            # stream the unaligned rows straight from HBM and remove it.
            xg = xf[:, : g0 * _CHUNK].reshape(B, g0, _SUB, _LANE)
        else:
            # Whole row fits in the tail: feed one dummy zero slab so the
            # kernel path stays uniform.
            g0 = 1
            xg = jnp.zeros((B, 1, _SUB, _LANE), jnp.float32)

    # Balanced tiling of the reduction axis: K = cdiv(g0, max), tile = cdiv(g0, K).
    # No round-up of g0 (and hence no data copy); g_tile <= g0 always, and the
    # partial last tile is masked in-kernel with static slicing.
    K = pl.cdiv(g0, g_tile_max)
    g_tile = pl.cdiv(g0, K)

    params = jnp.array([w1, b1, w2, b2, 1.0 / N], dtype=jnp.float32)

    kernel = functools.partial(pescaling_kernel, g0=g0, g_tile=g_tile)
    out = pl.pallas_call(
        kernel,
        out_shape=jax.ShapeDtypeStruct((B, 1, 1), jnp.float32),
        grid=(B, K),
        in_specs=[
            pl.BlockSpec(memory_space=pltpu.MemorySpace.SMEM),   # scalar params
            pl.BlockSpec(memory_space=pltpu.MemorySpace.SMEM),   # per-batch tail sums
            pl.BlockSpec((1, g_tile, _SUB, _LANE), lambda b, k: (b, k, 0, 0)),
        ],
        out_specs=pl.BlockSpec((1, 1, 1), lambda b, k: (b, 0, 0)),
        scratch_shapes=[pltpu.VMEM((_P, _SUB, _LANE), jnp.float32)],
        compiler_params=pltpu.CompilerParams(
            dimension_semantics=("parallel", "arbitrary"),   # B parallel, reduction last
            vmem_limit_bytes=32 * 1024 * 1024,               # 2 x 8 MiB buffers + slack
        ),
    )(params, tails, xg)
    return out


if __name__ == "__main__":
    key = jax.random.PRNGKey(0)
    kx, k1, k2, k3, k4, kx2, kx3, kx4 = jax.random.split(key, 8)

    # nn.Linear(1, 1) params: weight (1,1), bias (1,) -> scalars.
    w1 = float(jax.random.uniform(k1, (), minval=-1.0, maxval=1.0))
    b1 = float(jax.random.uniform(k2, (), minval=-1.0, maxval=1.0))
    w2 = float(jax.random.uniform(k3, (), minval=-1.0, maxval=1.0))
    b2 = float(jax.random.uniform(k4, (), minval=-1.0, maxval=1.0))

    def ref_fn(x):
        # Pure-JAX reference mirroring the PyTorch forward exactly.
        E = x.mean(-1).mean(-1).mean(-1)[:, None]                               # (B, 1)
        return jax.nn.sigmoid(jnp.maximum(E * w1 + b1, 0.0) * w2 + b2)[..., None]

    # Case 1: (8,128)-aligned N = C*H*W (zero-copy view, single reduction step).
    B, C, H, W = 2, 4, 16, 16
    x = jax.random.normal(kx, (B, C, H, W), dtype=jnp.float32)
    y = jax.block_until_ready(pescaling(x, w1, b1, w2, b2))
    assert y.shape == (B, 1, 1), y.shape
    assert jnp.allclose(y, ref_fn(x), atol=1e-5, rtol=1e-5)

    # Case 2: tiny ragged N < 1024 (pure wrapper-side tail path).
    x2 = jax.random.normal(kx2, (2, 3, 10, 10), dtype=jnp.float32)
    y2 = jax.block_until_ready(pescaling(x2, w1, b1, w2, b2))
    assert y2.shape == (2, 1, 1), y2.shape
    assert jnp.allclose(y2, ref_fn(x2), atol=1e-5, rtol=1e-5)

    # Case 3: aligned N with g0 not a multiple of g_tile (exercises the
    # multi-step reduction, the partial last tile and the chain-split paths).
    x3 = jax.random.normal(kx3, (2, 23, 32, 32), dtype=jnp.float32)   # g0 = 23 slabs
    y3 = jax.block_until_ready(pescaling(x3, w1, b1, w2, b2, g_tile_max=10))
    assert y3.shape == (2, 1, 1), y3.shape
    assert jnp.allclose(y3, ref_fn(x3), atol=1e-5, rtol=1e-5)

    # Case 4: ragged N with both full slabs and a sub-slab tail.
    x4 = jax.random.normal(kx4, (2, 3, 20, 20), dtype=jnp.float32)    # N = 1200
    y4 = jax.block_until_ready(pescaling(x4, w1, b1, w2, b2))
    assert y4.shape == (2, 1, 1), y4.shape
    assert jnp.allclose(y4, ref_fn(x4), atol=1e-5, rtol=1e-5)

    print("KERNEL_OK")
</pallas_src>

<mosaic_0001>
module attributes {stable_mosaic.version = 11 : i64} {
  func.func @pescaling_kernel(%arg0: i32, %arg1: i32, %arg2: memref<5xf32, #tpu.memory_space<smem>>, %arg3: memref<2xf32, #tpu.memory_space<smem>>, %arg4: memref<1x1x8x128xf32, #tpu.memory_space<vmem>>, %arg5: memref<1x1x1xf32, #tpu.memory_space<vmem>>, %arg6: memref<8x8x128xf32, #tpu.memory_space<vmem>>) attributes {dimension_semantics = [#tpu.dimension_semantics<parallel>, #tpu.dimension_semantics<arbitrary>], iteration_bounds = array<i64: 2, 1>, scalar_prefetch = 0 : i64, scratch_operands = 1 : i64, tpu.core_type = #tpu.core_type<tc>, window_params = [{transform_indices = @transform_0, window_bounds = array<i64: 5>}, {transform_indices = @transform_1, window_bounds = array<i64: 2>}, {transform_indices = @transform_2, window_bounds = array<i64: 1, 1, 8, 128>}, {transform_indices = @transform_3, window_bounds = array<i64: 1, 1, 1>}]} {
    %c0_i32 = arith.constant 0 : i32
    %0 = arith.cmpi eq, %arg1, %c0_i32 : i32
    %1 = arith.extui %0 : i1 to i32
    %c0_i32_0 = arith.constant 0 : i32
    %2 = arith.cmpi ne, %1, %c0_i32_0 : i32
    scf.if %2 {
      %cst_12 = arith.constant 0.000000e+00 : f32
      %15 = vector.broadcast %cst_12 : f32 to vector<8x8x128xf32>
      %c0_13 = arith.constant 0 : index
      %c0_14 = arith.constant 0 : index
      %c0_15 = arith.constant 0 : index
      %16 = vector.load %arg6[%c0_13, %c0_14, %c0_15] : memref<8x8x128xf32, #tpu.memory_space<vmem>>, vector<8x8x128xf32>
      tpu.vector_store %arg6[%c0_13, %c0_14, %c0_15], %15 {strides = array<i32>} : memref<8x8x128xf32, #tpu.memory_space<vmem>>, vector<8x8x128xf32>,
    } else {
    }
    %c0 = arith.constant 0 : index
    %c0_1 = arith.constant 0 : index
    %c0_2 = arith.constant 0 : index
    %3 = vector.load %arg6[%c0, %c0_1, %c0_2] : memref<8x8x128xf32, #tpu.memory_space<vmem>>, vector<1x8x128xf32>
    %4 = vector.shape_cast %3 : vector<1x8x128xf32> to vector<8x128xf32>
    %c0_3 = arith.constant 0 : index
    %c0_4 = arith.constant 0 : index
    %c0_5 = arith.constant 0 : index
    %c0_6 = arith.constant 0 : index
    %5 = vector.load %arg4[%c0_3, %c0_4, %c0_5, %c0_6] : memref<1x1x8x128xf32, #tpu.memory_space<vmem>>, vector<1x1x8x128xf32>
    %6 = vector.shape_cast %5 : vector<1x1x8x128xf32> to vector<1x8x128xf32>
    %cst = arith.constant dense<0.000000e+00> : vector<8x128xf32>
    %7 = vector.multi_reduction <add>, %6, %cst [0] : vector<1x8x128xf32> to vector<8x128xf32>
    %8 = arith.addf %4, %7 : vector<8x128xf32>
    %c0_7 = arith.constant 0 : index
    %c0_8 = arith.constant 0 : index
    %c0_9 = arith.constant 0 : index
    %9 = vector.load %arg6[%c0_7, %c0_8, %c0_9] : memref<8x8x128xf32, #tpu.memory_space<vmem>>, vector<1x8x128xf32>
    %10 = vector.shape_cast %9 : vector<1x8x128xf32> to vector<8x128xf32>
    %11 = vector.shape_cast %8 : vector<8x128xf32> to vector<1x8x128xf32>
    tpu.vector_store %arg6[%c0_7, %c0_8, %c0_9], %11 {strides = array<i32>} : memref<8x8x128xf32, #tpu.memory_space<vmem>>, vector<1x8x128xf32>,
    %c0_i32_10 = arith.constant 0 : i32
    %12 = arith.cmpi eq, %arg1, %c0_i32_10 : i32
    %13 = arith.extui %12 : i1 to i32
    %c0_i32_11 = arith.constant 0 : i32
    %14 = arith.cmpi ne, %13, %c0_i32_11 : i32
    scf.if %14 {
      %c0_12 = arith.constant 0 : index
      %15 = memref.load %arg2[%c0_12] : memref<5xf32, #tpu.memory_space<smem>>
      %c1 = arith.constant 1 : index
      %16 = memref.load %arg2[%c1] : memref<5xf32, #tpu.memory_space<smem>>
      %c2 = arith.constant 2 : index
      %17 = memref.load %arg2[%c2] : memref<5xf32, #tpu.memory_space<smem>>
      %c3 = arith.constant 3 : index
      %18 = memref.load %arg2[%c3] : memref<5xf32, #tpu.memory_space<smem>>
      %c4 = arith.constant 4 : index
      %19 = memref.load %arg2[%c4] : memref<5xf32, #tpu.memory_space<smem>>
      %c0_13 = arith.constant 0 : index
      %c0_14 = arith.constant 0 : index
      %c0_15 = arith.constant 0 : index
      %20 = vector.load %arg6[%c0_13, %c0_14, %c0_15] : memref<8x8x128xf32, #tpu.memory_space<vmem>>, vector<8x8x128xf32>
      %21 = vector.shape_cast %20 : vector<8x8x128xf32> to vector<1x8x8x128xf32>
      %cst_16 = arith.constant dense<0.000000e+00> : vector<1xf32>
      %22 = vector.multi_reduction <add>, %21, %cst_16 [1, 2, 3] : vector<1x8x8x128xf32> to vector<1xf32>
      %23 = vector.shape_cast %22 : vector<1xf32> to vector<1x1x1x1xf32>
      %24 = vector.extract %23[0, 0, 0, 0] : f32 from vector<1x1x1x1xf32>
      %25 = vector.broadcast %24 : f32 to vector<1x1x1xf32>
      %26 = arith.index_cast %arg0 : i32 to index
      %27 = memref.load %arg3[%26] : memref<2xf32, #tpu.memory_space<smem>>
      %28 = vector.broadcast %27 : f32 to vector<1x1x1xf32>
      %29 = arith.addf %25, %28 : vector<1x1x1xf32>
      %30 = vector.broadcast %19 : f32 to vector<1x1x1xf32>
      %31 = arith.mulf %29, %30 : vector<1x1x1xf32>
      %32 = vector.broadcast %15 : f32 to vector<1x1x1xf32>
      %33 = arith.mulf %31, %32 : vector<1x1x1xf32>
      %34 = vector.broadcast %16 : f32 to vector<1x1x1xf32>
      %35 = arith.addf %33, %34 : vector<1x1x1xf32>
      %cst_17 = arith.constant 0.000000e+00 : f32
      %36 = vector.broadcast %cst_17 : f32 to vector<1x1x1xf32>
      %37 = arith.maximumf %35, %36 : vector<1x1x1xf32>
      %38 = vector.broadcast %17 : f32 to vector<1x1x1xf32>
      %39 = arith.mulf %37, %38 : vector<1x1x1xf32>
      %40 = vector.broadcast %18 : f32 to vector<1x1x1xf32>
      %41 = arith.addf %39, %40 : vector<1x1x1xf32>
      %42 = arith.negf %41 : vector<1x1x1xf32>
      %43 = math.exp %42 : vector<1x1x1xf32>
      %cst_18 = arith.constant 1.000000e+00 : f32
      %44 = vector.broadcast %cst_18 : f32 to vector<1x1x1xf32>
      %45 = arith.addf %44, %43 : vector<1x1x1xf32>
      %46 = arith.divf %44, %45 : vector<1x1x1xf32>
      %c0_19 = arith.constant 0 : index
      %c0_20 = arith.constant 0 : index
      %c0_21 = arith.constant 0 : index
      %47 = vector.load %arg5[%c0_19, %c0_20, %c0_21] : memref<1x1x1xf32, #tpu.memory_space<vmem>>, vector<1x1x1xf32>
      tpu.vector_store %arg5[%c0_19, %c0_20, %c0_21], %46 {strides = array<i32>} : memref<1x1x1xf32, #tpu.memory_space<vmem>>, vector<1x1x1xf32>,
    } else {
    }
    return
  }
  func.func @transform_0(%arg0: i32, %arg1: i32) -> i32 {
    %c0_i32 = arith.constant 0 : i32
    %c0_i32_0 = arith.constant 0 : i32
    return %c0_i32 : i32
  }
  func.func @transform_1(%arg0: i32, %arg1: i32) -> i32 {
    %c0_i32 = arith.constant 0 : i32
    %c0_i32_0 = arith.constant 0 : i32
    return %c0_i32 : i32
  }
  func.func @transform_2(%arg0: i32, %arg1: i32) -> (i32, i32, i32, i32) {
    %c0_i32 = arith.constant 0 : i32
    %c0_i32_0 = arith.constant 0 : i32
    %c0_i32_1 = arith.constant 0 : i32
    return %arg0, %arg1, %c0_i32, %c0_i32_0 : i32, i32, i32, i32
  }
  func.func @transform_3(%arg0: i32, %arg1: i32) -> (i32, i32, i32) {
    %c0_i32 = arith.constant 0 : i32
    %c0_i32_0 = arith.constant 0 : i32
    %c0_i32_1 = arith.constant 0 : i32
    return %arg0, %c0_i32, %c0_i32_0 : i32, i32, i32
  }
}

</mosaic_0001>

<llo_original>
// kernel: tpu_custom_call.1
$region0: #{tpu_custom_call.1}
  #allocation0 [shape = 'u32[]', space=smem, size = 0x4, offset = 0x4, fixed_abs, tag = 'smem constant byte address 0x4 - core index']
  #allocation1 [shape = 'u32[144,128]{1,0:T(1,128)}', space=vmem, size = 0x12000, scoped, tag = 'internal scratch']
  #allocation2 [shape = 'f32[8,8,128]{2,1,0:T(8,128)}', space=vmem, size = 0x8000, scoped, tag = 'scratch operand']
  %s0 = inlined_call_operand.hbm [shape: f32[5], index: 0, kind: input, shape index: {}]
  %s1 = inlined_call_operand.vmem [shape: f32[2], index: 1, kind: input, shape index: {}]
  %s2 = inlined_call_operand.hbm [shape: f32[2,1,8,128], index: 2, kind: input, shape index: {}]
  %s3 = inlined_call_operand.vmem [shape: f32[2,1,1], index: 3, kind: output, shape index: {}]
  %s4 = sld [smem:[#allocation0]]
  $region65: #{tpu_custom_call.1} parent=0
    _
  %s6 = ssub.s32 1, %s4
  %s7 = scalar_select 0, %s6, %s4
  $region1: #{tpu_custom_call.1} parent=0
    #allocation3 [shape = 'u8[512]{0}', space=smem, size = 0x200, scoped, tag = 'input window, operand 0, single buffered']
    #allocation4 [shape = 's32[2]{0}', space=sflag, size = 0x8, scoped, tag = 'scoped memory for tpu_custom_call.1']
    #allocation5 [shape = 's32[2]{0}', space=sflag, size = 0x8, scoped, tag = 'scoped memory for tpu_custom_call.1']
    #allocation6 [shape = 's32[2]{0}', space=sflag, size = 0x8, scoped, tag = 'scoped memory for tpu_custom_call.1']
    #allocation7 [shape = 'u8[512]{0}', space=smem, size = 0x200, scoped, tag = 'input window, operand 1, single buffered']
    #allocation8 [shape = 'u8[8192]{0}', space=vmem, size = 0x2000, scoped, tag = 'input window, operand 2']
    %8 = vsyncpa [#allocation5], 0
    %9 = vsyncpa [#allocation6], 0
    %10 = vsyncpa [#allocation4], 0
    %s11 = scalar_lea.sflag [#allocation4], 1
    %12 = vsyncpa %s11, 0
    loop: start=0, step=1, limit=4
    $region2: #{tpu_custom_call.1} parent=1 // loop_pre_header
      _
    $region3: #{tpu_custom_call.1} parent=1 // loop_header
      %s14 = sphi 0, %s18
      %p15 = scmp.ge.s32.totalorder %s14, 4
      %s21 = sphi 0, %s33
      %s22 = sphi 0, %s29
      %s23 = sphi 0, %s21
      %s24 = sphi 0, %s22
      %s25 = sphi 0, %s23
      %s26 = sphi 0, %s24
      %s34 = sphi 0, %s34
      %s36 = sphi 0, %s34
      %s37 = sphi 0, %s36
      %s51 = sphi 0, %s37
      %s55 = sphi 0, %s55
      %s57 = sphi 0, %s55
      %s58 = sphi 0, %s57
      %s72 = sphi 0, %s58
      %s80 = sphi 0, %s82
      %s83 = sphi 0, %s80
      %s84 = sphi 0, %s83
      %s100 = sphi 0, %s84
      %s106 = sphi 0, %s108
      %s109 = sphi 0, %s106
      %s110 = sphi 0, %s109
      %s126 = sphi 0, %s110
    $region4: #{tpu_custom_call.1} parent=1 // loop_header_branch
      %17 = sbr.rel (%p15) target = $region8
    $region5: #{tpu_custom_call.1} parent=1 // loop_body
      %s19 = ssub.s32 %s14, 1
      %s20 = ssub.s32 %s14, 2
      %s27 = sadd.s32 1, %s22
      %p28 = scmp.ge.s32.totalorder %s27, 1
      %s29 = scalar_select %p28, 0, %s27
      %s30 = sadd.s32 1, %s21
      %s31 = scalar_select %p28, %s30, %s21
      %p32 = scmp.ge.s32.totalorder %s31, 2
      %s33 = scalar_select %p32, 0, %s31
      %s35 = sadd.s32 %s34, 1
      %p38 = scmp.eq.s32.totalorder %s14, 1
      %p39 = scmp.ne.s32.totalorder %s34, %s36
      %p40 = scmp.eq.s32.totalorder %s14, 0
      %p41 = por %p39, %p40
      %p42 = scmp.ne.s32.totalorder %s34, %s36
      %p43 = scmp.eq.s32.totalorder %s19, 1
      %p44 = por %p42, %p43
      %p45 = scmp.ne.s32.totalorder %s36, %s37
      %p46 = scmp.eq.s32.totalorder %s19, 0
      %p47 = por %p45, %p46
      %p48 = scmp.ne.s32.totalorder %s36, %s37
      %p49 = scmp.eq.s32.totalorder %s20, 1
      %p50 = por %p48, %p49
      %p52 = scmp.ne.s32.totalorder %s37, %s51
      %p53 = scmp.eq.s32.totalorder %s20, 0
      %p54 = por %p52, %p53
      %s56 = sadd.s32 %s55, 1
      %p59 = scmp.eq.s32.totalorder %s14, 1
      %p60 = scmp.ne.s32.totalorder %s55, %s57
      %p61 = scmp.eq.s32.totalorder %s14, 0
      %p62 = por %p60, %p61
      %p63 = scmp.ne.s32.totalorder %s55, %s57
      %p64 = scmp.eq.s32.totalorder %s19, 1
      %p65 = por %p63, %p64
      %p66 = scmp.ne.s32.totalorder %s57, %s58
      %p67 = scmp.eq.s32.totalorder %s19, 0
      %p68 = por %p66, %p67
      %p69 = scmp.ne.s32.totalorder %s57, %s58
      %p70 = scmp.eq.s32.totalorder %s20, 1
      %p71 = por %p69, %p70
      %p73 = scmp.ne.s32.totalorder %s58, %s72
      %p74 = scmp.eq.s32.totalorder %s20, 0
      %p75 = por %p73, %p74
      %s76 = ssub.s32 %s21, %s33
      %s77 = ssub.s32 %s22, %s29
      %s78 = sor.u32 %s76, %s77
      %p79 = scmp.eq.s32.totalorder %s78, 0
      %s81 = sadd.s32 %s80, 1
      %s82 = scalar_select %p79, %s80, %s81
      %p85 = pneg %p79
      %p86 = scmp.eq.s32.totalorder %s14, 1
      %p87 = por %p85, %p86
      %p88 = scmp.ne.s32.totalorder %s80, %s83
      %p89 = scmp.eq.s32.totalorder %s14, 0
      %p90 = por %p88, %p89
      %p91 = scmp.ne.s32.totalorder %s80, %s83
      %p92 = scmp.eq.s32.totalorder %s19, 1
      %p93 = por %p91, %p92
      %p94 = scmp.ne.s32.totalorder %s83, %s84
      %p95 = scmp.eq.s32.totalorder %s19, 0
      %p96 = por %p94, %p95
      %p97 = scmp.ne.s32.totalorder %s83, %s84
      %p98 = scmp.eq.s32.totalorder %s20, 1
      %p99 = por %p97, %p98
      %p101 = scmp.ne.s32.totalorder %s84, %s100
      %p102 = scmp.eq.s32.totalorder %s20, 0
      %p103 = por %p101, %p102
      %s104 = ssub.s32 %s21, %s33
      %p105 = scmp.eq.s32.totalorder %s104, 0
      %s107 = sadd.s32 %s106, 1
      %s108 = scalar_select %p105, %s106, %s107
      %p111 = pneg %p105
      %p112 = scmp.eq.s32.totalorder %s14, 1
      %p113 = por %p111, %p112
      %p114 = scmp.ne.s32.totalorder %s106, %s109
      %p115 = scmp.eq.s32.totalorder %s14, 0
      %p116 = por %p114, %p115
      %p117 = scmp.ne.s32.totalorder %s106, %s109
      %p118 = scmp.eq.s32.totalorder %s19, 1
      %p119 = por %p117, %p118
      %p120 = scmp.ne.s32.totalorder %s109, %s110
      %p121 = scmp.eq.s32.totalorder %s19, 0
      %p122 = por %p120, %p121
      %p123 = scmp.ne.s32.totalorder %s109, %s110
      %p124 = scmp.eq.s32.totalorder %s20, 1
      %p125 = por %p123, %p124
      %p127 = scmp.ne.s32.totalorder %s110, %s126
      %p128 = scmp.eq.s32.totalorder %s20, 0
      %p129 = por %p127, %p128
      %p130 = scmp.le.s32.totalorder 1, %s14
      %p131 = scmp.lt.s32.totalorder %s14, 3
      %p132 = pnand %p130, %p131
      %p133 = pneg %p132
      // Predicated region
      $region9: #{tpu_custom_call.1} parent=5 // pred_check
        _
      $region10: #{tpu_custom_call.1} parent=5 // pred_check_branch
        %135 = sbr.rel (%p132) target = $region12
      $region11: #{tpu_custom_call.1} parent=5 // pred_region
        %s136 = ssub.s32 %s14, 1
        // Predicated region
        $region13: #{tpu_custom_call.1} parent=11 // pred_check
          %p137 = pneg %p47
        $region14: #{tpu_custom_call.1} parent=11 // pred_check_branch
          %139 = sbr.rel (%p137) target = $region16
        $region15: #{tpu_custom_call.1} parent=11 // pred_region
          %s141 = ssub.s32 16, 16
          %142 = vsyncadd [#allocation5], %s141
          %145 = dma.hbm_to_smem %s0, 16, [#allocation3], [#allocation5]
        $region16: #{tpu_custom_call.1} parent=11 // pred_fallthru
          _
        // Predicated region
        $region17: #{tpu_custom_call.1} parent=11 // pred_check
          %p146 = pneg %p68
        $region18: #{tpu_custom_call.1} parent=11 // pred_check_branch
          %148 = sbr.rel (%p146) target = $region20
        $region19: #{tpu_custom_call.1} parent=11 // pred_region
          %s150 = ssub.s32 16, 16
          %151 = vsyncadd [#allocation6], %s150
          %s153 = sshll.u32 %s1, 4
          %s154 = int_to_ptr.vmem [resolvable:$true] %s153
          %156 = dma.vmem_to_smem %s154, 16, [#allocation7], [#allocation6]
        $region20: #{tpu_custom_call.1} parent=11 // pred_fallthru
          _
      $region12: #{tpu_custom_call.1} parent=5 // pred_fallthru
        _
      %p157 = scmp.lt.s32.totalorder %s14, 2
      // Predicated region
      $region21: #{tpu_custom_call.1} parent=5 // pred_check
        %p158 = pneg %p157
      $region22: #{tpu_custom_call.1} parent=5 // pred_check_branch
        %160 = sbr.rel (%p158) target = $region24
      $region23: #{tpu_custom_call.1} parent=5 // pred_region
        // Predicated region
        $region25: #{tpu_custom_call.1} parent=23 // pred_check
          %p161 = pneg %p90
        $region26: #{tpu_custom_call.1} parent=23 // pred_check_branch
          %163 = sbr.rel (%p161) target = $region28
        $region27: #{tpu_custom_call.1} parent=23 // pred_region
          %s164 = sand.u32 %s80, 1
          %s165 = scalar_lea.sflag [#allocation4], %s164
          %s166 = sand.u32 %s80, 1
          %s167 = smul.addr %s166, 8
          %s168 = scalar_lea.vmem [#allocation8], %s167
          %s170 = ssub.s32 128, 128
          %171 = vsyncadd %s165, %s170
          %s172 = sadd.s32 %s22, %s21
          %s173 = smul.addr %s172, 128
          %s174 = scalar_lea.hbm %s2, %s173
          %s176 = sshll.u32 %s168, 4
          %s177 = int_to_ptr.vmem [resolvable:$true] %s176
          %179 = dma.hbm_to_vmem [thread:$0]  %s174, 128, %s177, %s165
        $region28: #{tpu_custom_call.1} parent=23 // pred_fallthru
          _
      $region24: #{tpu_custom_call.1} parent=5 // pred_fallthru
        _
      %p180 = scmp.le.s32.totalorder 1, %s14
      %p181 = scmp.lt.s32.totalorder %s14, 3
      %p182 = pnand %p180, %p181
      %p183 = pneg %p182
      // Predicated region
      $region29: #{tpu_custom_call.1} parent=5 // pred_check
        _
      $region30: #{tpu_custom_call.1} parent=5 // pred_check_branch
        %185 = sbr.rel (%p182) target = $region32
      $region31: #{tpu_custom_call.1} parent=5 // pred_region
        %s186 = ssub.s32 %s14, 1
        // Predicated region
        $region33: #{tpu_custom_call.1} parent=31 // pred_check
          %p187 = pneg %p47
        $region34: #{tpu_custom_call.1} parent=31 // pred_check_branch
          %189 = sbr.rel (%p187) target = $region36
        $region35: #{tpu_custom_call.1} parent=31 // pred_region
          %190 = dma.done [#allocation5], 16
        $region36: #{tpu_custom_call.1} parent=31 // pred_fallthru
          _
        // Predicated region
        $region37: #{tpu_custom_call.1} parent=31 // pred_check
          %p191 = pneg %p68
        $region38: #{tpu_custom_call.1} parent=31 // pred_check_branch
          %193 = sbr.rel (%p191) target = $region40
        $region39: #{tpu_custom_call.1} parent=31 // pred_region
          %194 = dma.done [#allocation6], 16
        $region40: #{tpu_custom_call.1} parent=31 // pred_fallthru
          _
        %s195 = sand.u32 %s83, 1
        %s196 = scalar_lea.sflag [#allocation4], %s195
        %s197 = sand.u32 %s83, 1
        %s198 = smul.addr %s197, 8
        %s199 = scalar_lea.vmem [#allocation8], %s198
        // Predicated region
        $region41: #{tpu_custom_call.1} parent=31 // pred_check
          %p200 = pneg %p96
        $region42: #{tpu_custom_call.1} parent=31 // pred_check_branch
          %202 = sbr.rel (%p200) target = $region44
        $region43: #{tpu_custom_call.1} parent=31 // pred_region
          %203 = dma.done %s196, 128
        $region44: #{tpu_custom_call.1} parent=31 // pred_fallthru
          _
        %204 = sfence
        %p205 = pneg %p47
        %p206 = pneg %p44
        %p207 = pneg %p68
        %p208 = pneg %p65
        %s209 = sand.u32 %s83, 1
        %s210 = scalar_lea.sflag [#allocation4], %s209
        %s211 = sand.u32 %s83, 1
        %s212 = smul.addr %s211, 8
        %s213 = scalar_lea.vmem [#allocation8], %s212
        %p214 = pneg %p96
        %p215 = pneg %p93
        %p216 = pneg %p122
        %p217 = pneg %p119
        %p218 = scmp.lt.s32.totalorder %s23, 1
        %s219 = scalar_select %p218, %s23, 1
        %s220 = scalar_lea.vmem %s3, %s219
        %p221 = scmp.lt.s32.totalorder %s23, 1
        %s222 = scalar_select %p221, %s23, 1
        %s223 = scalar_lea.vmem %s3, %s222
        %p224 = scmp.eq.s32.totalorder %s24, 0
        // Predicated region
        $region45: #{tpu_custom_call.1} parent=31 // pred_check
          %p225 = pneg %p224
        $region46: #{tpu_custom_call.1} parent=31 // pred_check_branch
          %227 = sbr.rel (%p225) target = $region48
        $region47: #{tpu_custom_call.1} parent=31 // pred_region
          %228 = vst [vmem:[#allocation2] sm:$0xff] 0.0
          %229 = vst [vmem:[#allocation2 + $0x8] sm:$0xff] 0.0
          %230 = vst [vmem:[#allocation2 + $0x10] sm:$0xff] 0.0
          %231 = vst [vmem:[#allocation2 + $0x18] sm:$0xff] 0.0
          %232 = vst [vmem:[#allocation2 + $0x20] sm:$0xff] 0.0
          %233 = vst [vmem:[#allocation2 + $0x28] sm:$0xff] 0.0
          %234 = vst [vmem:[#allocation2 + $0x30] sm:$0xff] 0.0
          %235 = vst [vmem:[#allocation2 + $0x38] sm:$0xff] 0.0
        $region48: #{tpu_custom_call.1} parent=31 // pred_fallthru
          _
        %v236 = vld [vmem:[#allocation2] sm:$0xff]
        %v237 = vld [vmem:[%s199] sm:$0xff]
        %v238 = vadd.f32 %v237, 0.0
        %v239 = vadd.f32 %v236, %v238
        %240 = vst [vmem:[#allocation2] sm:$0xff] %v239
        // Predicated region
        $region49: #{tpu_custom_call.1} parent=31 // pred_check
          %p241 = pneg %p224
        $region50: #{tpu_custom_call.1} parent=31 // pred_check_branch
          %243 = sbr.rel (%p241) target = $region52
        $region51: #{tpu_custom_call.1} parent=31 // pred_region
          %s244 = sld [smem:[#allocation3]]
          %s245 = sld [smem:[#allocation3 + $0x1]]
          %s246 = sld [smem:[#allocation3 + $0x2]]
          %s247 = sld [smem:[#allocation3 + $0x3]]
          %s248 = sld [smem:[#allocation3 + $0x4]]
          %v249 = vld [vmem:[#allocation2] sm:$0xff]
          %v250 = vld [vmem:[#allocation2 + $0x8] sm:$0xff]
          %v251 = vld [vmem:[#allocation2 + $0x10] sm:$0xff]
          %v252 = vld [vmem:[#allocation2 + $0x18] sm:$0xff]
          %v253 = vld [vmem:[#allocation2 + $0x20] sm:$0xff]
          %v254 = vld [vmem:[#allocation2 + $0x28] sm:$0xff]
          %v255 = vld [vmem:[#allocation2 + $0x30] sm:$0xff]
          %v256 = vld [vmem:[#allocation2 + $0x38] sm:$0xff]
          %v257 = vadd.f32 %v249, %v250
          %v258 = vadd.f32 %v257, %v251
          %v259 = vadd.f32 %v258, %v252
          %v260 = vadd.f32 %v259, %v253
          %v261 = vadd.f32 %v260, %v254
          %v262 = vadd.f32 %v261, %v255
          %v263 = vadd.f32 %v262, %v256
          %264 = vadd.xlane.f32.xlu0 %v263
          %v265 = vpop.xlane.xlu0 %264
          %v266 = vrot.slane %v265, 4
          %v267 = vadd.f32 %v265, %v266
          %v268 = vrot.slane %v267, 2
          %v269 = vadd.f32 %v267, %v268
          %v270 = vrot.slane %v269, 1
          %v271 = vadd.f32 %v269, %v270
          %s272 = vtos %v271
          %v273 = vstv %s272
          %s274 = sld [smem:[#allocation7 + %s23]]
          %v275 = vstv %s274
          %v276 = vadd.f32 %v273, %v275
          %v277 = vstv %s248
          %v278 = vmul.f32 %v276, %v277
          %v279 = vstv %s244
          %v280 = vmul.f32 %v278, %v279
          %v281 = vstv %s245
          %v282 = vadd.f32 %v280, %v281
          %v283 = vmax.f32 %v282, 0.0
          %v284 = vstv %s246
          %v285 = vmul.f32 %v283, %v284
          %v286 = vstv %s247
          %v287 = vadd.f32 %v285, %v286
          %v288 = vxor.u32 %v287, 2147483648
          %v289 = vmul.f32 %v288, 1.442695
          %v290 = vpow.pop %v289
          %v291 = vadd.f32 %v290, 1.0
          %v292 = vrcp.pop %v291
          %v293 = vmul.f32 1.0, %v292
          %vm294 = vcmask 0
          %295 = vst.msk [vmem:[%s223] sm:$0x1] %vm294, %v293
        $region52: #{tpu_custom_call.1} parent=31 // pred_fallthru
          _
        %p296 = scmp.lt.s32.totalorder %s23, 1
        %s297 = scalar_select %p296, %s23, 1
        %s298 = scalar_lea.vmem %s3, %s297
        // Predicated region
        $region53: #{tpu_custom_call.1} parent=31 // pred_check
          %p299 = pneg %p119
        $region54: #{tpu_custom_call.1} parent=31 // pred_check_branch
          %301 = sbr.rel (%p299) target = $region56
        $region55: #{tpu_custom_call.1} parent=31 // pred_region
          _
        $region56: #{tpu_custom_call.1} parent=31 // pred_fallthru
          _
      $region32: #{tpu_custom_call.1} parent=5 // pred_fallthru
        _
      %p302 = scmp.le.s32.totalorder 2, %s14
      // Predicated region
      $region57: #{tpu_custom_call.1} parent=5 // pred_check
        %p303 = pneg %p302
      $region58: #{tpu_custom_call.1} parent=5 // pred_check_branch
        %305 = sbr.rel (%p303) target = $region60
      $region59: #{tpu_custom_call.1} parent=5 // pred_region
        %s306 = ssub.s32 %s14, 2
        // Predicated region
        $region61: #{tpu_custom_call.1} parent=59 // pred_check
          %p307 = pneg %p125
        $region62: #{tpu_custom_call.1} parent=59 // pred_check_branch
          %309 = sbr.rel (%p307) target = $region64
        $region63: #{tpu_custom_call.1} parent=59 // pred_region
          %p310 = scmp.lt.s32.totalorder %s25, 1
          %s311 = scalar_select %p310, %s25, 1
          %s312 = scalar_lea.vmem %s3, %s311
        $region64: #{tpu_custom_call.1} parent=59 // pred_fallthru
          _
      $region60: #{tpu_custom_call.1} parent=5 // pred_fallthru
        _
    $region6: #{tpu_custom_call.1} parent=1 // loop_footer
      %s18 = sadd.s32 1, %s14
    $region7: #{tpu_custom_call.1} parent=1 // loop_footer_branch
      %13 = sbr.rel target = $region3
    $region8: #{tpu_custom_call.1} parent=1 // loop_exit
      _
    %313 = vsyncpa [#allocation4], 1
    %s314 = scalar_lea.sflag [#allocation4], 1
    %315 = vsyncpa %s314, 1
    %316 = vsyncpa [#allocation5], 1
    %s317 = scalar_lea.sflag [#allocation5], 1
    %318 = vsyncpa %s317, 1
    %319 = vsyncpa [#allocation6], 1
    %s320 = scalar_lea.sflag [#allocation6], 1
    %321 = vsyncpa %s320, 1

</llo_original>
